<compile_context>
chip_gen: v5e
topology: v5e:2x2
jax: 0.10.0
libtpu: 0.0.40
codegen_flags: <defaults>
</compile_context>

<pallas_src>
import jax
import jax.numpy as jnp
import numpy as np
from jax.experimental import pallas as pl
from jax.experimental.pallas import tpu as pltpu

HIDDEN = 128                                   # module default hidden_size
NUM_LATENTS = 2
SMALL_HIDDEN = (HIDDEN + NUM_LATENTS) // 2     # int((hidden + num_latents)/2) = 65
HEAD_WIDTH = 2 * NUM_LATENTS                   # fused [mu | log_sigma] head

# Parameter-slab row offsets (every block starts on an 8-sublane boundary).
_W1 = 0                    # rows   0:2   : fc1 weight (2, 128)
_W2 = 8                    # rows   8:136 : fc2 weight (128, 128)
_W3 = _W2 + HIDDEN         # rows 136:264 : fc3 weight
_W4 = _W3 + HIDDEN         # rows 264:392 : fc4 weight
_W5 = _W4 + HIDDEN         # rows 392:520 : fc5 weight, cols 0:65 valid, rest zero
_WH = _W5 + HIDDEN         # rows 520:648 : fused head weight, rows 0:65 / cols 0:4 valid
_BIAS = _WH + HIDDEN       # rows 648:654 : b1, b2, b3, b4, b5(pad), [bmu|bsig](pad)
SLAB_ROWS = _BIAS + 8      # 656, multiple of 8


def _softplus(x):
    # Numerically stable softplus using primitives that lower cleanly (VPU + EUP).
    return jnp.maximum(x, 0.0) + jnp.log1p(jnp.exp(-jnp.abs(x)))


def latent_encoder_kernel(x_ref, y_ref, p_ref, out_ref):
    x = x_ref[...]                                   # (N, 1)
    y = y_ref[...]                                   # (N, 1)

    # fc1 on the VPU: a K=2 matmul expressed as two broadcast multiply-adds.
    w1x = p_ref[_W1:_W1 + 1, :]                      # (1, HIDDEN)
    w1y = p_ref[_W1 + 1:_W1 + 2, :]                  # (1, HIDDEN)
    b1 = p_ref[_BIAS:_BIAS + 1, :]
    h = jnp.maximum(x * w1x + y * w1y + b1, 0.0)     # (N, HIDDEN)

    # fc2..fc4 on the MXU (per-point MLP == batched matmul over the N points).
    h = jnp.maximum(
        jnp.dot(h, p_ref[_W2:_W2 + HIDDEN, :], preferred_element_type=jnp.float32)
        + p_ref[_BIAS + 1:_BIAS + 2, :], 0.0)
    h = jnp.maximum(
        jnp.dot(h, p_ref[_W3:_W3 + HIDDEN, :], preferred_element_type=jnp.float32)
        + p_ref[_BIAS + 2:_BIAS + 3, :], 0.0)
    h = (jnp.dot(h, p_ref[_W4:_W4 + HIDDEN, :], preferred_element_type=jnp.float32)
         + p_ref[_BIAS + 3:_BIAS + 4, :])            # fc4: no relu

    # mean-pool over the N context points  ->  (1, HIDDEN)   (XLU sublane reduce)
    r = jnp.mean(h, axis=0, keepdims=True)

    # fc5 + relu; padded cols (>= SMALL_HIDDEN) of w5/b5 are zero -> s there is 0.
    s = jnp.maximum(
        jnp.dot(r, p_ref[_W5:_W5 + HIDDEN, :], preferred_element_type=jnp.float32)
        + p_ref[_BIAS + 4:_BIAS + 5, :], 0.0)        # (1, HIDDEN)

    # Fused mu/sigma heads in ONE matmul; zero rows of the head weight make the
    # padded part of s contribute nothing. cols 0:2 = mu, cols 2:4 = log_sigma.
    head = (jnp.dot(s, p_ref[_WH:_WH + HIDDEN, :], preferred_element_type=jnp.float32)
            + p_ref[_BIAS + 5:_BIAS + 6, :])         # (1, HIDDEN)

    # sigma = 0.1 + 0.9*softplus(log_sigma) only on the sigma lanes via a lane
    # select (no cross-lane concat); lanes >= HEAD_WIDTH are discarded by wrapper.
    lane = jax.lax.broadcasted_iota(jnp.int32, head.shape, 1)
    sig = 0.1 + 0.9 * _softplus(head)
    out_ref[...] = jnp.where(lane < NUM_LATENTS, head, sig)


def latent_encoder_forward(context_x, context_y, param_slab):
    """Returns (mu, sigma) of the Normal distribution, each shaped (1, NUM_LATENTS)."""
    vmem = pl.BlockSpec(memory_space=pltpu.MemorySpace.VMEM)
    out = pl.pallas_call(
        latent_encoder_kernel,
        out_shape=jax.ShapeDtypeStruct((1, HIDDEN), jnp.float32),
        in_specs=[vmem, vmem, vmem],
        out_specs=vmem,
    )(context_x.astype(jnp.float32), context_y.astype(jnp.float32), param_slab)
    mu = out[:, :NUM_LATENTS]
    sigma = out[:, NUM_LATENTS:HEAD_WIDTH]
    return mu, sigma


def init_params(key):
    """Deterministic PyTorch-default-style init: U(-1/sqrt(fan_in), 1/sqrt(fan_in))."""
    def linear(k, fan_in, fan_out):
        kw, kb = jax.random.split(k)
        bound = 1.0 / np.sqrt(fan_in)
        w = jax.random.uniform(kw, (fan_in, fan_out), jnp.float32, -bound, bound)
        b = jax.random.uniform(kb, (1, fan_out), jnp.float32, -bound, bound)
        return w, b

    keys = jax.random.split(key, 7)
    w1, b1 = linear(keys[0], 2, HIDDEN)
    w2, b2 = linear(keys[1], HIDDEN, HIDDEN)
    w3, b3 = linear(keys[2], HIDDEN, HIDDEN)
    w4, b4 = linear(keys[3], HIDDEN, HIDDEN)
    w5, b5 = linear(keys[4], HIDDEN, SMALL_HIDDEN)
    wmu, bmu = linear(keys[5], SMALL_HIDDEN, NUM_LATENTS)
    wsig, bsig = linear(keys[6], SMALL_HIDDEN, NUM_LATENTS)
    return (w1, b1, w2, b2, w3, b3, w4, b4, w5, b5, wmu, bmu, wsig, bsig)


def pack_params(params):
    """Init-time packing of all weights/biases into one (SLAB_ROWS, HIDDEN) slab."""
    (w1, b1, w2, b2, w3, b3, w4, b4, w5, b5, wmu, bmu, wsig, bsig) = [
        np.asarray(p, np.float32) for p in params]
    slab = np.zeros((SLAB_ROWS, HIDDEN), np.float32)
    slab[_W1:_W1 + 2, :] = w1
    slab[_W2:_W2 + HIDDEN, :] = w2
    slab[_W3:_W3 + HIDDEN, :] = w3
    slab[_W4:_W4 + HIDDEN, :] = w4
    slab[_W5:_W5 + HIDDEN, :SMALL_HIDDEN] = w5
    slab[_WH:_WH + SMALL_HIDDEN, :NUM_LATENTS] = wmu
    slab[_WH:_WH + SMALL_HIDDEN, NUM_LATENTS:HEAD_WIDTH] = wsig
    slab[_BIAS + 0, :] = b1[0]
    slab[_BIAS + 1, :] = b2[0]
    slab[_BIAS + 2, :] = b3[0]
    slab[_BIAS + 3, :] = b4[0]
    slab[_BIAS + 4, :SMALL_HIDDEN] = b5[0]
    slab[_BIAS + 5, :NUM_LATENTS] = bmu[0]
    slab[_BIAS + 5, NUM_LATENTS:HEAD_WIDTH] = bsig[0]
    return jnp.asarray(slab)


def reference_forward(context_x, context_y, params):
    """Pure-JAX reference mirroring the PyTorch forward exactly."""
    (w1, b1, w2, b2, w3, b3, w4, b4, w5, b5, wmu, bmu, wsig, bsig) = params
    xy = jnp.concatenate([context_x, context_y], axis=-1).astype(jnp.float32)
    h = jax.nn.relu(xy @ w1 + b1)
    h = jax.nn.relu(h @ w2 + b2)
    h = jax.nn.relu(h @ w3 + b3)
    h = h @ w4 + b4
    r = jnp.mean(h, axis=0, keepdims=True)
    s = jax.nn.relu(r @ w5 + b5)
    mu = s @ wmu + bmu
    log_sigma = s @ wsig + bsig
    sigma = 0.1 + 0.9 * jax.nn.softplus(log_sigma)
    return mu, sigma


if __name__ == "__main__":
    key = jax.random.PRNGKey(0)
    k_params, k_x, k_y = jax.random.split(key, 3)

    N = 8  # number of context points
    context_x = jax.random.normal(k_x, (N, 1), jnp.float32)
    context_y = jax.random.normal(k_y, (N, 1), jnp.float32)

    params = init_params(k_params)
    slab = pack_params(params)   # one-time parameter packing (init-time, not per call)

    mu, sigma = latent_encoder_forward(context_x, context_y, slab)
    jax.block_until_ready((mu, sigma))

    mu_ref, sigma_ref = reference_forward(context_x, context_y, params)
    np.testing.assert_allclose(np.asarray(mu), np.asarray(mu_ref), rtol=1e-5, atol=1e-5)
    np.testing.assert_allclose(np.asarray(sigma), np.asarray(sigma_ref), rtol=1e-5, atol=1e-5)

    print("KERNEL_OK")
</pallas_src>

<mosaic_0001>
module attributes {stable_mosaic.version = 11 : i64} {
  func.func @latent_encoder_kernel(%arg0: memref<8x1xf32, #tpu.memory_space<vmem>>, %arg1: memref<8x1xf32, #tpu.memory_space<vmem>>, %arg2: memref<656x128xf32, #tpu.memory_space<vmem>>, %arg3: memref<1x128xf32, #tpu.memory_space<vmem>>) attributes {dimension_semantics = [], scalar_prefetch = 0 : i64, scratch_operands = 0 : i64, tpu.core_type = #tpu.core_type<tc>} {
    %c0 = arith.constant 0 : index
    %c0_0 = arith.constant 0 : index
    %0 = vector.load %arg0[%c0, %c0_0] : memref<8x1xf32, #tpu.memory_space<vmem>>, vector<8x1xf32>
    %c0_1 = arith.constant 0 : index
    %c0_2 = arith.constant 0 : index
    %1 = vector.load %arg1[%c0_1, %c0_2] : memref<8x1xf32, #tpu.memory_space<vmem>>, vector<8x1xf32>
    %c0_3 = arith.constant 0 : index
    %c0_4 = arith.constant 0 : index
    %2 = vector.load %arg2[%c0_3, %c0_4] : memref<656x128xf32, #tpu.memory_space<vmem>>, vector<1x128xf32>
    %c1 = arith.constant 1 : index
    %c0_5 = arith.constant 0 : index
    %3 = vector.load %arg2[%c1, %c0_5] : memref<656x128xf32, #tpu.memory_space<vmem>>, vector<1x128xf32>
    %c648 = arith.constant 648 : index
    %c0_6 = arith.constant 0 : index
    %4 = vector.load %arg2[%c648, %c0_6] : memref<656x128xf32, #tpu.memory_space<vmem>>, vector<1x128xf32>
    %5 = vector.broadcast %0 : vector<8x1xf32> to vector<8x128xf32>
    %6 = vector.broadcast %2 : vector<1x128xf32> to vector<8x128xf32>
    %7 = arith.mulf %5, %6 : vector<8x128xf32>
    %8 = vector.broadcast %1 : vector<8x1xf32> to vector<8x128xf32>
    %9 = vector.broadcast %3 : vector<1x128xf32> to vector<8x128xf32>
    %10 = arith.mulf %8, %9 : vector<8x128xf32>
    %11 = arith.addf %7, %10 : vector<8x128xf32>
    %12 = vector.broadcast %4 : vector<1x128xf32> to vector<8x128xf32>
    %13 = arith.addf %11, %12 : vector<8x128xf32>
    %cst = arith.constant 0.000000e+00 : f32
    %14 = vector.broadcast %cst : f32 to vector<8x128xf32>
    %15 = arith.maximumf %13, %14 : vector<8x128xf32>
    %c8 = arith.constant 8 : index
    %c0_7 = arith.constant 0 : index
    %16 = vector.load %arg2[%c8, %c0_7] : memref<656x128xf32, #tpu.memory_space<vmem>>, vector<128x128xf32>
    %cst_8 = arith.constant dense<0.000000e+00> : vector<8x128xf32>
    %17 = tpu.matmul %15, %16, %cst_8 {dimension_numbers = #tpu.dot_dimension_numbers<[1], [0], [0], [1], [0, 0, 1, 1], [], []>} : vector<8x128xf32>, vector<128x128xf32>, vector<8x128xf32> -> vector<8x128xf32>
    %c649 = arith.constant 649 : index
    %c0_9 = arith.constant 0 : index
    %18 = vector.load %arg2[%c649, %c0_9] : memref<656x128xf32, #tpu.memory_space<vmem>>, vector<1x128xf32>
    %19 = vector.broadcast %18 : vector<1x128xf32> to vector<8x128xf32>
    %20 = arith.addf %17, %19 : vector<8x128xf32>
    %cst_10 = arith.constant 0.000000e+00 : f32
    %21 = vector.broadcast %cst_10 : f32 to vector<8x128xf32>
    %22 = arith.maximumf %20, %21 : vector<8x128xf32>
    %c136 = arith.constant 136 : index
    %c0_11 = arith.constant 0 : index
    %23 = vector.load %arg2[%c136, %c0_11] : memref<656x128xf32, #tpu.memory_space<vmem>>, vector<128x128xf32>
    %cst_12 = arith.constant dense<0.000000e+00> : vector<8x128xf32>
    %24 = tpu.matmul %22, %23, %cst_12 {dimension_numbers = #tpu.dot_dimension_numbers<[1], [0], [0], [1], [0, 0, 1, 1], [], []>} : vector<8x128xf32>, vector<128x128xf32>, vector<8x128xf32> -> vector<8x128xf32>
    %c650 = arith.constant 650 : index
    %c0_13 = arith.constant 0 : index
    %25 = vector.load %arg2[%c650, %c0_13] : memref<656x128xf32, #tpu.memory_space<vmem>>, vector<1x128xf32>
    %26 = vector.broadcast %25 : vector<1x128xf32> to vector<8x128xf32>
    %27 = arith.addf %24, %26 : vector<8x128xf32>
    %cst_14 = arith.constant 0.000000e+00 : f32
    %28 = vector.broadcast %cst_14 : f32 to vector<8x128xf32>
    %29 = arith.maximumf %27, %28 : vector<8x128xf32>
    %c264 = arith.constant 264 : index
    %c0_15 = arith.constant 0 : index
    %30 = vector.load %arg2[%c264, %c0_15] : memref<656x128xf32, #tpu.memory_space<vmem>>, vector<128x128xf32>
    %cst_16 = arith.constant dense<0.000000e+00> : vector<8x128xf32>
    %31 = tpu.matmul %29, %30, %cst_16 {dimension_numbers = #tpu.dot_dimension_numbers<[1], [0], [0], [1], [0, 0, 1, 1], [], []>} : vector<8x128xf32>, vector<128x128xf32>, vector<8x128xf32> -> vector<8x128xf32>
    %c651 = arith.constant 651 : index
    %c0_17 = arith.constant 0 : index
    %32 = vector.load %arg2[%c651, %c0_17] : memref<656x128xf32, #tpu.memory_space<vmem>>, vector<1x128xf32>
    %33 = vector.broadcast %32 : vector<1x128xf32> to vector<8x128xf32>
    %34 = arith.addf %31, %33 : vector<8x128xf32>
    %cst_18 = arith.constant dense<0.000000e+00> : vector<128xf32>
    %35 = vector.multi_reduction <add>, %34, %cst_18 [0] : vector<8x128xf32> to vector<128xf32>
    %36 = vector.shape_cast %35 : vector<128xf32> to vector<1x128xf32>
    %cst_19 = arith.constant 8.000000e+00 : f32
    %37 = vector.broadcast %cst_19 : f32 to vector<1x128xf32>
    %38 = arith.divf %36, %37 : vector<1x128xf32>
    %c392 = arith.constant 392 : index
    %c0_20 = arith.constant 0 : index
    %39 = vector.load %arg2[%c392, %c0_20] : memref<656x128xf32, #tpu.memory_space<vmem>>, vector<128x128xf32>
    %cst_21 = arith.constant dense<0.000000e+00> : vector<1x128xf32>
    %40 = tpu.matmul %38, %39, %cst_21 {dimension_numbers = #tpu.dot_dimension_numbers<[1], [0], [0], [1], [0, 0, 1, 1], [], []>} : vector<1x128xf32>, vector<128x128xf32>, vector<1x128xf32> -> vector<1x128xf32>
    %c652 = arith.constant 652 : index
    %c0_22 = arith.constant 0 : index
    %41 = vector.load %arg2[%c652, %c0_22] : memref<656x128xf32, #tpu.memory_space<vmem>>, vector<1x128xf32>
    %42 = arith.addf %40, %41 : vector<1x128xf32>
    %cst_23 = arith.constant 0.000000e+00 : f32
    %43 = vector.broadcast %cst_23 : f32 to vector<1x128xf32>
    %44 = arith.maximumf %42, %43 : vector<1x128xf32>
    %c520 = arith.constant 520 : index
    %c0_24 = arith.constant 0 : index
    %45 = vector.load %arg2[%c520, %c0_24] : memref<656x128xf32, #tpu.memory_space<vmem>>, vector<128x128xf32>
    %cst_25 = arith.constant dense<0.000000e+00> : vector<1x128xf32>
    %46 = tpu.matmul %44, %45, %cst_25 {dimension_numbers = #tpu.dot_dimension_numbers<[1], [0], [0], [1], [0, 0, 1, 1], [], []>} : vector<1x128xf32>, vector<128x128xf32>, vector<1x128xf32> -> vector<1x128xf32>
    %c653 = arith.constant 653 : index
    %c0_26 = arith.constant 0 : index
    %47 = vector.load %arg2[%c653, %c0_26] : memref<656x128xf32, #tpu.memory_space<vmem>>, vector<1x128xf32>
    %48 = arith.addf %46, %47 : vector<1x128xf32>
    %49 = tpu.iota {dimensions = array<i32: 1>} : vector<1x128xi32>
    %cst_27 = arith.constant 0.000000e+00 : f32
    %50 = vector.broadcast %cst_27 : f32 to vector<1x128xf32>
    %51 = arith.maximumf %48, %50 : vector<1x128xf32>
    %52 = math.absf %48 : vector<1x128xf32>
    %cst_28 = arith.constant 0.000000e+00 : f32
    %53 = vector.broadcast %cst_28 : f32 to vector<1x128xf32>
    %54 = arith.subf %53, %52 : vector<1x128xf32>
    %55 = math.exp %54 : vector<1x128xf32>
    %56 = math.log1p %55 : vector<1x128xf32>
    %57 = arith.addf %51, %56 : vector<1x128xf32>
    %cst_29 = arith.constant 0.899999976 : f32
    %58 = vector.broadcast %cst_29 : f32 to vector<1x128xf32>
    %59 = arith.mulf %58, %57 : vector<1x128xf32>
    %cst_30 = arith.constant 1.000000e-01 : f32
    %60 = vector.broadcast %cst_30 : f32 to vector<1x128xf32>
    %61 = arith.addf %60, %59 : vector<1x128xf32>
    %c2_i32 = arith.constant 2 : i32
    %62 = vector.broadcast %c2_i32 : i32 to vector<1x128xi32>
    %63 = arith.cmpi slt, %49, %62 : vector<1x128xi32>
    %64 = arith.select %63, %48, %61 : vector<1x128xi1>, vector<1x128xf32>
    %c0_31 = arith.constant 0 : index
    %c0_32 = arith.constant 0 : index
    %65 = vector.load %arg3[%c0_31, %c0_32] : memref<1x128xf32, #tpu.memory_space<vmem>>, vector<1x128xf32>
    tpu.vector_store %arg3[%c0_31, %c0_32], %64 {strides = array<i32>} : memref<1x128xf32, #tpu.memory_space<vmem>>, vector<1x128xf32>,
    return
  }
}

</mosaic_0001>

<llo_original>
// kernel: tpu_custom_call.1
$region0: #{tpu_custom_call.1}
  #allocation0 [shape = 'u32[]', space=smem, size = 0x4, offset = 0x4, fixed_abs, tag = 'smem constant byte address 0x4 - core index']
  #allocation1 [shape = 'u32[72,128]{1,0:T(1,128)}', space=vmem, size = 0x9000, scoped, tag = 'internal scratch']
  %s0 = inlined_call_operand.vmem [shape: f32[8,1], index: 0, kind: input, shape index: {}]
  %s1 = inlined_call_operand.vmem [shape: f32[8,1], index: 1, kind: input, shape index: {}]
  %s2 = inlined_call_operand.hbm [shape: f32[656,128], index: 2, kind: input, shape index: {}]
  %s3 = inlined_call_operand.hbm [shape: f32[1,128], index: 3, kind: output, shape index: {}]
  %s4 = sld [smem:[#allocation0]]
  $region26: #{tpu_custom_call.1} parent=0
    _
  %s6 = ssub.s32 1, %s4
  %s7 = scalar_select 0, %s6, %s4
  $region1: #{tpu_custom_call.1} parent=0
    #allocation2 [shape = 'u8[335872]{0}', space=vmem, size = 0x52000, scoped, tag = 'input window, operand 2, single buffered']
    #allocation3 [shape = 's32[1]{0}', space=sflag, size = 0x4, scoped, tag = 'scoped memory for tpu_custom_call.1']
    #allocation4 [shape = 's32[1]{0}', space=sflag, size = 0x4, scoped, tag = 'scoped memory for tpu_custom_call.1']
    #allocation5 [shape = 'u8[512]{0}', space=vmem, size = 0x400, scoped, tag = 'output window, operand 0, single buffered']
    %8 = vsyncpa [#allocation3], 0
    %9 = vsyncpa [#allocation4], 0
    // Predicated region
    $region2: #{tpu_custom_call.1} parent=1 // pred_check
      _
    $region3: #{tpu_custom_call.1} parent=1 // pred_check_branch
      %11 = sbr.rel (0) target = $region5
    $region4: #{tpu_custom_call.1} parent=1 // pred_region
      _
    $region5: #{tpu_custom_call.1} parent=1 // pred_fallthru
      _
    // Predicated region
    $region6: #{tpu_custom_call.1} parent=1 // pred_check
      _
    $region7: #{tpu_custom_call.1} parent=1 // pred_check_branch
      %13 = sbr.rel (0) target = $region9
    $region8: #{tpu_custom_call.1} parent=1 // pred_region
      _
    $region9: #{tpu_custom_call.1} parent=1 // pred_fallthru
      _
    // Predicated region
    $region10: #{tpu_custom_call.1} parent=1 // pred_check
      _
    $region11: #{tpu_custom_call.1} parent=1 // pred_check_branch
      %15 = sbr.rel (0) target = $region13
    $region12: #{tpu_custom_call.1} parent=1 // pred_region
      %17 = vsyncadd [#allocation3], 0
      %s18 = sshll.u32 %s2, 4
      %s19 = int_to_ptr.hbm [resolvable:$true] %s18
      %s20 = sshll.u32 [#allocation2], 4
      %s21 = int_to_ptr.vmem [resolvable:$true] %s20
      %26 = dma.hbm_to_vmem [thread:$0]  %s19, 10496, %s21, [#allocation3], 128, 128, 8
    $region13: #{tpu_custom_call.1} parent=1 // pred_fallthru
      _
    // Predicated region
    $region14: #{tpu_custom_call.1} parent=1 // pred_check
      _
    $region15: #{tpu_custom_call.1} parent=1 // pred_check_branch
      %28 = sbr.rel (0) target = $region17
    $region16: #{tpu_custom_call.1} parent=1 // pred_region
      %30 = dma.done [#allocation3], 10496
    $region17: #{tpu_custom_call.1} parent=1 // pred_fallthru
      _
    %v31 = vld [vmem:[%s0] sm:$0xff]
    %v32 = vld [vmem:[%s1] sm:$0xff]
    %v33 = vld [vmem:[#allocation2] sm:$0x1]
    %v34 = vld [vmem:[#allocation2 + $0x1] sm:$0x1]
    %v35 = vld [vmem:[#allocation2 + $0x288] sm:$0x1]
    %37 = vset.pattern.permute.xlu0 0
    %38 = vperm.xlu0 %37, %v31
    %v39 = vpop.permute.xlu0 %38
    %v41 = vperm.slane %v33, 0
    %v42 = vmul.f32 %v39, %v41
    %44 = vset.pattern.permute.xlu0 0
    %45 = vperm.xlu0 %44, %v32
    %v46 = vpop.permute.xlu0 %45
    %v48 = vperm.slane %v34, 0
    %v49 = vmul.f32 %v46, %v48
    %v50 = vadd.f32 %v42, %v49
    %v51 = vperm.slane %v35, 0
    %v52 = vadd.f32 %v50, %v51
    %v53 = vmax.f32 %v52, 0.0
    %v54 = vld [vmem:[#allocation2 + $0x8] sm:$0xff]
    %v55 = vld [vmem:[#allocation2 + $0x10] sm:$0xff]
    %v56 = vld [vmem:[#allocation2 + $0x18] sm:$0xff]
    %v57 = vld [vmem:[#allocation2 + $0x20] sm:$0xff]
    %v58 = vld [vmem:[#allocation2 + $0x28] sm:$0xff]
    %v59 = vld [vmem:[#allocation2 + $0x30] sm:$0xff]
    %v60 = vld [vmem:[#allocation2 + $0x38] sm:$0xff]
    %v61 = vld [vmem:[#allocation2 + $0x40] sm:$0xff]
    %v62 = vld [vmem:[#allocation2 + $0x48] sm:$0xff]
    %v63 = vld [vmem:[#allocation2 + $0x50] sm:$0xff]
    %v64 = vld [vmem:[#allocation2 + $0x58] sm:$0xff]
    %v65 = vld [vmem:[#allocation2 + $0x60] sm:$0xff]
    %v66 = vld [vmem:[#allocation2 + $0x68] sm:$0xff]
    %v67 = vld [vmem:[#allocation2 + $0x70] sm:$0xff]
    %v68 = vld [vmem:[#allocation2 + $0x78] sm:$0xff]
    %v69 = vld [vmem:[#allocation2 + $0x80] sm:$0xff]
    %v70 = vld [vmem:[#allocation2 + $0x289] sm:$0x1]
    %v71 = vperm.slane %v70, 0
    %72 = vmatpush.msra.mxu0 %v69
    %73 = vmatpush.msra.mxu0 %v68
    %74 = vmatpush.msra.mxu0 %v67
    %75 = vmatpush.msra.mxu0 %v66
    %76 = vmatpush.msra.mxu0 %v65
    %77 = vmatpush.msra.mxu0 %v64
    %78 = vmatpush.msra.mxu0 %v63
    %79 = vmatpush.msra.mxu0 %v62
    %80 = vmatpush.msra.mxu0 %v61
    %81 = vmatpush.msra.mxu0 %v60
    %82 = vmatpush.msra.mxu0 %v59
    %83 = vmatpush.msra.mxu0 %v58
    %84 = vmatpush.msra.mxu0 %v57
    %85 = vmatpush.msra.mxu0 %v56
    %86 = vmatpush.msra.mxu0 %v55
    %87 = vmatpush.msra.mxu0 %v54
    %88 = vmatmul.f32.gmra.mxu0 %v53
    %v89 = vpop.f32.mrf.mxu0
    %v90 = vadd.f32 %v71, %v89
    %91 = vdwg.mxu0
    %v92 = vmax.f32 %v90, 0.0
    %v93 = vld [vmem:[#allocation2 + $0x88] sm:$0xff]
    %v94 = vld [vmem:[#allocation2 + $0x90] sm:$0xff]
    %v95 = vld [vmem:[#allocation2 + $0x98] sm:$0xff]
    %v96 = vld [vmem:[#allocation2 + $0xa0] sm:$0xff]
    %v97 = vld [vmem:[#allocation2 + $0xa8] sm:$0xff]
    %v98 = vld [vmem:[#allocation2 + $0xb0] sm:$0xff]
    %v99 = vld [vmem:[#allocation2 + $0xb8] sm:$0xff]
    %v100 = vld [vmem:[#allocation2 + $0xc0] sm:$0xff]
    %v101 = vld [vmem:[#allocation2 + $0xc8] sm:$0xff]
    %v102 = vld [vmem:[#allocation2 + $0xd0] sm:$0xff]
    %v103 = vld [vmem:[#allocation2 + $0xd8] sm:$0xff]
    %v104 = vld [vmem:[#allocation2 + $0xe0] sm:$0xff]
    %v105 = vld [vmem:[#allocation2 + $0xe8] sm:$0xff]
    %v106 = vld [vmem:[#allocation2 + $0xf0] sm:$0xff]
    %v107 = vld [vmem:[#allocation2 + $0xf8] sm:$0xff]
    %v108 = vld [vmem:[#allocation2 + $0x100] sm:$0xff]
    %v109 = vld [vmem:[#allocation2 + $0x28a] sm:$0x1]
    %v110 = vperm.slane %v109, 0
    %111 = vmatpush.msra.mxu0 %v108
    %112 = vmatpush.msra.mxu0 %v107
    %113 = vmatpush.msra.mxu0 %v106
    %114 = vmatpush.msra.mxu0 %v105
    %115 = vmatpush.msra.mxu0 %v104
    %116 = vmatpush.msra.mxu0 %v103
    %117 = vmatpush.msra.mxu0 %v102
    %118 = vmatpush.msra.mxu0 %v101
    %119 = vmatpush.msra.mxu0 %v100
    %120 = vmatpush.msra.mxu0 %v99
    %121 = vmatpush.msra.mxu0 %v98
    %122 = vmatpush.msra.mxu0 %v97
    %123 = vmatpush.msra.mxu0 %v96
    %124 = vmatpush.msra.mxu0 %v95
    %125 = vmatpush.msra.mxu0 %v94
    %126 = vmatpush.msra.mxu0 %v93
    %127 = vmatmul.f32.gmra.mxu0 %v92
    %v128 = vpop.f32.mrf.mxu0
    %v129 = vadd.f32 %v110, %v128
    %130 = vdwg.mxu0
    %v131 = vmax.f32 %v129, 0.0
    %v132 = vld [vmem:[#allocation2 + $0x108] sm:$0xff]
    %v133 = vld [vmem:[#allocation2 + $0x110] sm:$0xff]
    %v134 = vld [vmem:[#allocation2 + $0x118] sm:$0xff]
    %v135 = vld [vmem:[#allocation2 + $0x120] sm:$0xff]
    %v136 = vld [vmem:[#allocation2 + $0x128] sm:$0xff]
    %v137 = vld [vmem:[#allocation2 + $0x130] sm:$0xff]
    %v138 = vld [vmem:[#allocation2 + $0x138] sm:$0xff]
    %v139 = vld [vmem:[#allocation2 + $0x140] sm:$0xff]
    %v140 = vld [vmem:[#allocation2 + $0x148] sm:$0xff]
    %v141 = vld [vmem:[#allocation2 + $0x150] sm:$0xff]
    %v142 = vld [vmem:[#allocation2 + $0x158] sm:$0xff]
    %v143 = vld [vmem:[#allocation2 + $0x160] sm:$0xff]
    %v144 = vld [vmem:[#allocation2 + $0x168] sm:$0xff]
    %v145 = vld [vmem:[#allocation2 + $0x170] sm:$0xff]
    %v146 = vld [vmem:[#allocation2 + $0x178] sm:$0xff]
    %v147 = vld [vmem:[#allocation2 + $0x180] sm:$0xff]
    %v148 = vld [vmem:[#allocation2 + $0x28b] sm:$0x1]
    %v149 = vperm.slane %v148, 0
    %150 = vmatpush.msra.mxu0 %v147
    %151 = vmatpush.msra.mxu0 %v146
    %152 = vmatpush.msra.mxu0 %v145
    %153 = vmatpush.msra.mxu0 %v144
    %154 = vmatpush.msra.mxu0 %v143
    %155 = vmatpush.msra.mxu0 %v142
    %156 = vmatpush.msra.mxu0 %v141
    %157 = vmatpush.msra.mxu0 %v140
    %158 = vmatpush.msra.mxu0 %v139
    %159 = vmatpush.msra.mxu0 %v138
    %160 = vmatpush.msra.mxu0 %v137
    %161 = vmatpush.msra.mxu0 %v136
    %162 = vmatpush.msra.mxu0 %v135
    %163 = vmatpush.msra.mxu0 %v134
    %164 = vmatpush.msra.mxu0 %v133
    %165 = vmatpush.msra.mxu0 %v132
    %166 = vmatmul.f32.gmra.mxu0 %v131
    %v167 = vpop.f32.mrf.mxu0
    %v168 = vadd.f32 %v149, %v167
    %169 = vdwg.mxu0
    %v170 = vrot.slane %v168, 4
    %v171 = vadd.f32 %v168, %v170
    %v172 = vrot.slane %v171, 2
    %v173 = vadd.f32 %v171, %v172
    %v174 = vrot.slane %v173, 1
    %v175 = vadd.f32 %v173, %v174
    %v176 = vrcp.pop 8.0
    %v177 = vmul.f32 8.0, %v176
    %v178 = vsub.f32 1.0, %v177
    %v179 = vmul.f32 %v176, %v178
    %v180 = vadd.f32 %v176, %v179
    %vm181 = vweird.f32 %v176
    %v182 = vsel %vm181, %v176, %v180
    %v183 = vmul.f32 %v175, %v182
    %v184 = vld [vmem:[#allocation2 + $0x188] sm:$0xff]
    %v185 = vld [vmem:[#allocation2 + $0x190] sm:$0xff]
    %v186 = vld [vmem:[#allocation2 + $0x198] sm:$0xff]
    %v187 = vld [vmem:[#allocation2 + $0x1a0] sm:$0xff]
    %v188 = vld [vmem:[#allocation2 + $0x1a8] sm:$0xff]
    %v189 = vld [vmem:[#allocation2 + $0x1b0] sm:$0xff]
    %v190 = vld [vmem:[#allocation2 + $0x1b8] sm:$0xff]
    %v191 = vld [vmem:[#allocation2 + $0x1c0] sm:$0xff]
    %v192 = vld [vmem:[#allocation2 + $0x1c8] sm:$0xff]
    %v193 = vld [vmem:[#allocation2 + $0x1d0] sm:$0xff]
    %v194 = vld [vmem:[#allocation2 + $0x1d8] sm:$0xff]
    %v195 = vld [vmem:[#allocation2 + $0x1e0] sm:$0xff]
    %v196 = vld [vmem:[#allocation2 + $0x1e8] sm:$0xff]
    %v197 = vld [vmem:[#allocation2 + $0x1f0] sm:$0xff]
    %v198 = vld [vmem:[#allocation2 + $0x1f8] sm:$0xff]
    %v199 = vld [vmem:[#allocation2 + $0x200] sm:$0xff]
    %v200 = vld [vmem:[#allocation2 + $0x28c] sm:$0x1]
    %201 = vmatpush.msra.mxu0 %v199
    %202 = vmatpush.msra.mxu0 %v198
    %203 = vmatpush.msra.mxu0 %v197
    %204 = vmatpush.msra.mxu0 %v196
    %205 = vmatpush.msra.mxu0 %v195
    %206 = vmatpush.msra.mxu0 %v194
    %207 = vmatpush.msra.mxu0 %v193
    %208 = vmatpush.msra.mxu0 %v192
    %209 = vmatpush.msra.mxu0 %v191
    %210 = vmatpush.msra.mxu0 %v190
    %211 = vmatpush.msra.mxu0 %v189
    %212 = vmatpush.msra.mxu0 %v188
    %213 = vmatpush.msra.mxu0 %v187
    %214 = vmatpush.msra.mxu0 %v186
    %215 = vmatpush.msra.mxu0 %v185
    %216 = vmatpush.msra.mxu0 %v184
    %217 = vmatmul.f32.gmra.mxu0 %v183
    %v218 = vpop.f32.mrf.mxu0
    %v219 = vadd.f32 %v200, %v218
    %220 = vdwg.mxu0
    %v221 = vmax.f32 %v219, 0.0
    %v222 = vld [vmem:[#allocation2 + $0x208] sm:$0xff]
    %v223 = vld [vmem:[#allocation2 + $0x210] sm:$0xff]
    %v224 = vld [vmem:[#allocation2 + $0x218] sm:$0xff]
    %v225 = vld [vmem:[#allocation2 + $0x220] sm:$0xff]
    %v226 = vld [vmem:[#allocation2 + $0x228] sm:$0xff]
    %v227 = vld [vmem:[#allocation2 + $0x230] sm:$0xff]
    %v228 = vld [vmem:[#allocation2 + $0x238] sm:$0xff]
    %v229 = vld [vmem:[#allocation2 + $0x240] sm:$0xff]
    %v230 = vld [vmem:[#allocation2 + $0x248] sm:$0xff]
    %v231 = vld [vmem:[#allocation2 + $0x250] sm:$0xff]
    %v232 = vld [vmem:[#allocation2 + $0x258] sm:$0xff]
    %v233 = vld [vmem:[#allocation2 + $0x260] sm:$0xff]
    %v234 = vld [vmem:[#allocation2 + $0x268] sm:$0xff]
    %v235 = vld [vmem:[#allocation2 + $0x270] sm:$0xff]
    %v236 = vld [vmem:[#allocation2 + $0x278] sm:$0xff]
    %v237 = vld [vmem:[#allocation2 + $0x280] sm:$0xff]
    %v238 = vld [vmem:[#allocation2 + $0x28d] sm:$0x1]
    %239 = vmatpush.msra.mxu0 %v237
    %240 = vmatpush.msra.mxu0 %v236
    %241 = vmatpush.msra.mxu0 %v235
    %242 = vmatpush.msra.mxu0 %v234
    %243 = vmatpush.msra.mxu0 %v233
    %244 = vmatpush.msra.mxu0 %v232
    %245 = vmatpush.msra.mxu0 %v231
    %246 = vmatpush.msra.mxu0 %v230
    %247 = vmatpush.msra.mxu0 %v229
    %248 = vmatpush.msra.mxu0 %v228
    %249 = vmatpush.msra.mxu0 %v227
    %250 = vmatpush.msra.mxu0 %v226
    %251 = vmatpush.msra.mxu0 %v225
    %252 = vmatpush.msra.mxu0 %v224
    %253 = vmatpush.msra.mxu0 %v223
    %254 = vmatpush.msra.mxu0 %v222
    %255 = vmatmul.f32.gmra.mxu0 %v221
    %v256 = vpop.f32.mrf.mxu0
    %v257 = vadd.f32 %v238, %v256
    %258 = vdwg.mxu0
    %v259 = vlaneseq
    %v260 = vand.u32 %v259, 127
    %v261 = vmax.f32 %v257, 0.0
    %v262 = vand.u32 2147483647, %v257
    %v263 = vsub.f32 0.0, %v262
    %v264 = vmul.f32 %v263, 1.442695
    %v265 = vpow.pop %v264
    %v266 = vadd.f32 %v265, 1.0
    %v267 = vlog2.pop %v266
    %v268 = vmul.f32 %v267, 0.6931472
    %v269 = vmul.f32 -0.5, %v265
    %v270 = vadd.f32 %v269, 1.0
    %v271 = vmul.f32 %v270, %v265
    %v272 = vand.u32 2147483647, %v265
    %vm273 = vcmp.lt.f32.partialorder %v272, 0.0004427343
    %v274 = vsel %vm273, %v271, %v268
    %v275 = vadd.f32 %v261, %v274
    %v276 = vmul.f32 %v275, 0.9
    %v277 = vadd.f32 %v276, 0.1
    %vm278 = vcmp.lt.s32.totalorder %v260, 2
    %v279 = vsel %vm278, %v257, %v277
    %280 = vst [vmem:[#allocation5] sm:$0x1] %v279
    // Predicated region
    $region18: #{tpu_custom_call.1} parent=1 // pred_check
      _
    $region19: #{tpu_custom_call.1} parent=1 // pred_check_branch
      %282 = sbr.rel (0) target = $region21
    $region20: #{tpu_custom_call.1} parent=1 // pred_region
      %284 = vsyncadd [#allocation4], 0
      %s286 = sshll.u32 [#allocation5], 4
      %s287 = int_to_ptr.vmem [resolvable:$true] %s286
      %s288 = sshll.u32 %s3, 4
      %s289 = int_to_ptr.hbm [resolvable:$true] %s288
      %291 = dma.vmem_to_hbm [thread:$0]  %s287, 16, %s289, [#allocation4]
    $region21: #{tpu_custom_call.1} parent=1 // pred_fallthru
      _
    // Predicated region
    $region22: #{tpu_custom_call.1} parent=1 // pred_check
      _
    $region23: #{tpu_custom_call.1} parent=1 // pred_check_branch
      %293 = sbr.rel (0) target = $region25
    $region24: #{tpu_custom_call.1} parent=1 // pred_region
      %295 = dma.done [#allocation4], 16
    $region25: #{tpu_custom_call.1} parent=1 // pred_fallthru
      _
    %296 = vsyncpa [#allocation3], 1
    %297 = vsyncpa [#allocation4], 1

</llo_original>
